<compile_context>
chip_gen: v6e
topology: v6e:2x2x1
jax: 0.10.0
libtpu: 0.0.40
codegen_flags: <defaults>
</compile_context>

<pallas_src>
import functools

import numpy as np
import jax
import jax.numpy as jnp
from jax import lax
from jax.experimental import pallas as pl
from jax.experimental.pallas import tpu as pltpu

_NEG = -1e30  # "minus infinity" for masked columns


def _round_up(x, m):
    return ((x + m - 1) // m) * m


def _fused_hierarchy_ce_kernel(x_ref, w_ref, b_ref, lbl_ref, out_ref, acc_ref, *,
                               level_ranges, true_b, tb, w_pad):
    """Fused linear (K-tiled, bf16 MXU / f32 acc) + per-level cross-entropy.

    x_ref:   (TB, TK)      bf16   batch tile of features (K-tile)
    w_ref:   (TK, W_pad)   bf16   all levels' weights, zero-padded columns (K-tile)
    b_ref:   (1,  W_pad)   bf16   biases, zero-padded
    lbl_ref: (TB, L)       int32  labels pre-offset into the fused column space
    out_ref: (1, 8, 128)   f32    dense slab; [0,0,0] holds sum_b NLL for this batch tile
    acc_ref: (TB, W_pad)   f32    VMEM logits accumulator (persists across K steps)
    """
    bi = pl.program_id(0)
    ki = pl.program_id(1)

    @pl.when(ki == 0)
    def _():
        acc_ref[...] = jnp.zeros_like(acc_ref)

    # Partial (TB, TK) @ (TK, W_pad) bf16 matmul, accumulated in f32.
    acc_ref[...] += jnp.dot(x_ref[...], w_ref[...],
                            preferred_element_type=jnp.float32)

    @pl.when(ki == pl.num_programs(1) - 1)
    def _():
        logits = acc_ref[...] + b_ref[...].astype(jnp.float32)      # (TB, W_pad) f32
        col = lax.broadcasted_iota(jnp.int32, (tb, w_pad), 1)       # column ids
        row = lax.broadcasted_iota(jnp.int32, (tb, 1), 0)           # row ids within tile
        row_valid = (bi * tb + row) < true_b                        # mask padded batch rows
        neg = jnp.float32(_NEG)

        # Pass 1: per-level masked max (XLU), scattered into a per-column max matrix.
        # Masks are recomputed (2 cheap VPU compares), never kept across loops.
        mx = jnp.zeros_like(logits)
        for off, w in level_ranges:
            m = (col >= off) & (col < off + w)
            mval = jnp.max(jnp.where(m, logits, neg), axis=-1, keepdims=True)
            mx = jnp.where(m, mval, mx)
        shifted = logits - mx        # per-level max-shifted logits; logits/mx dead after this

        # Combined target-logit extraction: ONE masked reduce covering every level
        # (labels are pre-offset into disjoint per-level column ranges).
        lbl = lbl_ref[...]           # single (TB, L) load; sliced as a value below
        tgt_mask = col == lbl[:, 0:1]
        for l in range(1, len(level_ranges)):
            tgt_mask = tgt_mask | (col == lbl[:, l:l + 1])
        tgt_shift = jnp.sum(jnp.where(tgt_mask, shifted, 0.0), axis=-1, keepdims=True)

        e = jnp.exp(shifted)         # single shared EUP pass over the fused width

        # Pass 2: per-level sum-exp.  The per-level maxima cancel between the LSE and the
        # target logit, so:  sum_l CE_l(row) = sum_l log(s_l) - sum_l shifted[target_l].
        log_sum = jnp.zeros((tb, 1), jnp.float32)
        for off, w in level_ranges:
            m = (col >= off) & (col < off + w)
            s = jnp.sum(jnp.where(m, e, 0.0), axis=-1, keepdims=True)   # s >= 1 always
            log_sum = log_sum + jnp.log(s)

        nll = jnp.where(row_valid, log_sum - tgt_shift, 0.0)            # (TB, 1)
        total = jnp.sum(nll)
        out_ref[...] = jnp.broadcast_to(total, out_ref.shape)           # dense (8,128) store


def hierarchy_loss(x, hierarchy, params, layer_width, *,
                   matmul_dtype=jnp.bfloat16, tb_cap=128, tk_cap=512):
    """Sum over levels of mean-over-batch cross-entropy via one fused pallas_call."""
    B, D = x.shape
    L = len(layer_width)
    offsets = np.concatenate([[0], np.cumsum(layer_width)]).astype(np.int64)
    w_tot = int(offsets[-1])
    w_pad = max(128, _round_up(w_tot, 128))        # lane-padded fused width

    # --- K (in_dim) tiling: bounds per-step VMEM (v7x: 64 MiB/TC) and restores deep
    # DMA/compute pipelining along D at production in_dim. ---
    d128 = _round_up(D, 128)
    tk = min(tk_cap, d128)
    d_pad = _round_up(d128, tk)
    nk = d_pad // tk

    # --- Batch tiling: aim for >= 2 batch tiles so the "parallel" axis shards across
    # v7x's two TensorCores; tb=128 keeps the epilogue vreg-resident on all generations
    # (raise tb_cap to 256-512 on v5e/v6e with 128 MiB VMEM if desired). ---
    tb = min(tb_cap, _round_up(pl.cdiv(B, 2), 8))
    nb = pl.cdiv(B, tb)
    b_pad = nb * tb

    # Fuse per-level weights/biases into one lane-padded matrix (pad rows/cols are zero),
    # then cast to bf16 for the MXU (f32 accumulation in-kernel preserves CE accuracy).
    w_fused = jnp.zeros((d_pad, w_pad), jnp.float32)
    b_fused = jnp.zeros((1, w_pad), jnp.float32)
    for i, (w, b) in enumerate(params):
        off = int(offsets[i])
        w_fused = w_fused.at[:D, off:off + layer_width[i]].set(w)
        b_fused = b_fused.at[:, off:off + layer_width[i]].set(b)
    w_fused = w_fused.astype(matmul_dtype)
    b_fused = b_fused.astype(matmul_dtype)

    # Labels pre-offset into the fused column space -> (B, L) int32.
    glbl = hierarchy.astype(jnp.int32) + jnp.asarray(offsets[:-1], jnp.int32)[None, :]

    x = x.astype(matmul_dtype)
    if b_pad != B or d_pad != D:
        x = jnp.pad(x, ((0, b_pad - B), (0, d_pad - D)))
    if b_pad != B:
        glbl = jnp.pad(glbl, ((0, b_pad - B), (0, 0)))

    level_ranges = tuple((int(offsets[i]), int(layer_width[i])) for i in range(L))
    kernel = functools.partial(
        _fused_hierarchy_ce_kernel,
        level_ranges=level_ranges, true_b=B, tb=tb, w_pad=w_pad)

    itemsize = jnp.dtype(matmul_dtype).itemsize
    cost = pl.CostEstimate(
        flops=2 * b_pad * d_pad * w_pad,
        transcendentals=b_pad * (w_tot + L),                   # real exp columns + per-level logs
        bytes_accessed=(itemsize * (b_pad * d_pad + nb * d_pad * w_pad + w_pad)
                        + 4 * (b_pad * L + nb * 8 * 128)))

    per_block = pl.pallas_call(
        kernel,
        out_shape=jax.ShapeDtypeStruct((nb, 8, 128), jnp.float32),
        grid=(nb, nk),
        in_specs=[
            pl.BlockSpec((tb, tk), lambda i, k: (i, k)),       # x tile (batch x K)
            pl.BlockSpec((tk, w_pad), lambda i, k: (k, 0)),    # fused weights (K-tiled)
            pl.BlockSpec((1, w_pad), lambda i, k: (0, 0)),     # fused biases (256 B, resident)
            pl.BlockSpec((tb, L), lambda i, k: (i, 0)),        # pre-offset labels
        ],
        out_specs=pl.BlockSpec((1, 8, 128), lambda i, k: (i, 0, 0)),
        scratch_shapes=[pltpu.VMEM((tb, w_pad), jnp.float32)], # f32 logits accumulator
        compiler_params=pltpu.CompilerParams(
            dimension_semantics=("parallel", "arbitrary"),     # batch across TCs, K sequential
            vmem_limit_bytes=48 * 1024 * 1024,                 # < v7x 64 MiB physical; ample here
        ),
        cost_estimate=cost,
    )(x, w_fused, b_fused, glbl)

    # Each tile's [i,0,0] holds its NLL sum over valid rows (summed over levels);
    # each level's CE is a mean over the true batch.
    return jnp.sum(per_block[:, 0, 0]) * jnp.float32(1.0 / B)


class HierarchyClassifierPallas:
    """JAX/Pallas port of model/component/hierarchy.py::HierarchyClassifier."""

    def __init__(self, feat_dim, crop_height, crop_width, layer_width, key):
        self.in_dim = feat_dim * crop_height * crop_width
        self.layer_width = list(layer_width)
        self.params = []
        for i, width in enumerate(self.layer_width):
            kw, kb = jax.random.split(jax.random.fold_in(key, i))
            bound = 1.0 / float(np.sqrt(self.in_dim))
            w = jax.random.uniform(kw, (self.in_dim, width), jnp.float32, -bound, bound)
            b = jax.random.uniform(kb, (1, width), jnp.float32, -bound, bound)
            self.params.append((w, b))

    def forward(self, agg_data):
        x = agg_data["features"]                            # (B, in_dim) float32
        hierarchy = agg_data["hierarchy"].astype(jnp.int32)
        hierarchy = hierarchy[: x.shape[0]]                 # (B, n_levels)
        return hierarchy_loss(x, hierarchy, self.params, self.layer_width)


def _reference_loss(model, agg_data, matmul_dtype=jnp.bfloat16):
    """Pure-JAX reference (same bf16-matmul / f32-accumulate numerics as the kernel)."""
    x = agg_data["features"].astype(matmul_dtype)
    hierarchy = agg_data["hierarchy"].astype(jnp.int32)[: x.shape[0]]
    total = jnp.float32(0.0)
    for i, (w, b) in enumerate(model.params):
        logits = jnp.dot(x, w.astype(matmul_dtype), preferred_element_type=jnp.float32)
        logits = logits + b[0].astype(matmul_dtype).astype(jnp.float32)
        lse = jax.scipy.special.logsumexp(logits, axis=-1)
        tgt = jnp.take_along_axis(logits, hierarchy[:, i:i + 1], axis=-1)[:, 0]
        total = total + jnp.mean(lse - tgt)
    return total


if __name__ == "__main__":
    key = jax.random.PRNGKey(0)
    k_feat, k_lbl, k_param = jax.random.split(key, 3)

    # Small shapes consistent with the module:
    #   feat_dim=4, crop=8x8 -> in_dim=256, batch=2, layer_width=[4, 8, 16]
    B = 2
    feat_dim, crop_h, crop_w = 4, 8, 8
    layer_width = [4, 8, 16]
    in_dim = feat_dim * crop_h * crop_w

    features = jax.random.normal(k_feat, (B, in_dim), jnp.float32)
    hierarchy = jnp.stack(
        [
            jax.random.randint(jax.random.fold_in(k_lbl, i), (B,), 0, w)
            for i, w in enumerate(layer_width)
        ],
        axis=1,
    ).astype(jnp.int32)                                     # (B, n_levels)

    agg_data = {"features": features, "hierarchy": hierarchy}

    model = HierarchyClassifierPallas(feat_dim, crop_h, crop_w, layer_width, k_param)

    loss = model.forward(agg_data)
    loss = jax.block_until_ready(loss)

    ref = jax.block_until_ready(_reference_loss(model, agg_data))
    assert jnp.allclose(loss, ref, rtol=1e-4, atol=1e-3), (loss, ref)

    print("KERNEL_OK")
</pallas_src>

<mosaic_0001>
module attributes {stable_mosaic.version = 11 : i64} {
  func.func @_fused_hierarchy_ce_kernel(%arg0: i32, %arg1: i32, %arg2: memref<8x256xbf16, #tpu.memory_space<vmem>>, %arg3: memref<256x128xbf16, #tpu.memory_space<vmem>>, %arg4: memref<1x128xbf16, #tpu.memory_space<vmem>>, %arg5: memref<8x3xi32, #tpu.memory_space<vmem>>, %arg6: memref<1x8x128xf32, #tpu.memory_space<vmem>>, %arg7: memref<8x128xf32, #tpu.memory_space<vmem>>) attributes {dimension_semantics = [#tpu.dimension_semantics<parallel>, #tpu.dimension_semantics<arbitrary>], iteration_bounds = array<i64: 1, 1>, scalar_prefetch = 0 : i64, scratch_operands = 1 : i64, tpu.core_type = #tpu.core_type<tc>, window_params = [{transform_indices = @transform_0, window_bounds = array<i64: 8, 256>}, {transform_indices = @transform_1, window_bounds = array<i64: 256, 128>}, {pipeline_mode = #tpu.pipeline_mode<synchronous>, transform_indices = @transform_2, window_bounds = array<i64: 1, 128>}, {transform_indices = @transform_3, window_bounds = array<i64: 8, 3>}, {transform_indices = @transform_4, window_bounds = array<i64: 1, 8, 128>}]} {
    %c0_i32 = arith.constant 0 : i32
    %0 = arith.cmpi eq, %arg1, %c0_i32 : i32
    %1 = arith.extui %0 : i1 to i32
    %c0_i32_0 = arith.constant 0 : i32
    %2 = arith.cmpi ne, %1, %c0_i32_0 : i32
    scf.if %2 {
      %cst_10 = arith.constant 0.000000e+00 : f32
      %12 = vector.broadcast %cst_10 : f32 to vector<8x128xf32>
      %c0_11 = arith.constant 0 : index
      %c0_12 = arith.constant 0 : index
      %13 = vector.load %arg7[%c0_11, %c0_12] : memref<8x128xf32, #tpu.memory_space<vmem>>, vector<8x128xf32>
      tpu.vector_store %arg7[%c0_11, %c0_12], %12 {strides = array<i32>} : memref<8x128xf32, #tpu.memory_space<vmem>>, vector<8x128xf32>,
    } else {
    }
    %c0 = arith.constant 0 : index
    %c0_1 = arith.constant 0 : index
    %3 = vector.load %arg7[%c0, %c0_1] : memref<8x128xf32, #tpu.memory_space<vmem>>, vector<8x128xf32>
    %c0_2 = arith.constant 0 : index
    %c0_3 = arith.constant 0 : index
    %4 = vector.load %arg2[%c0_2, %c0_3] : memref<8x256xbf16, #tpu.memory_space<vmem>>, vector<8x256xbf16>
    %c0_4 = arith.constant 0 : index
    %c0_5 = arith.constant 0 : index
    %5 = vector.load %arg3[%c0_4, %c0_5] : memref<256x128xbf16, #tpu.memory_space<vmem>>, vector<256x128xbf16>
    %cst = arith.constant dense<0.000000e+00> : vector<8x128xf32>
    %6 = tpu.matmul %4, %5, %cst {dimension_numbers = #tpu.dot_dimension_numbers<[1], [0], [0], [1], [0, 0, 1, 1], [], []>} : vector<8x256xbf16>, vector<256x128xbf16>, vector<8x128xf32> -> vector<8x128xf32>
    %7 = arith.addf %3, %6 : vector<8x128xf32>
    %c0_6 = arith.constant 0 : index
    %c0_7 = arith.constant 0 : index
    %8 = vector.load %arg7[%c0_6, %c0_7] : memref<8x128xf32, #tpu.memory_space<vmem>>, vector<8x128xf32>
    tpu.vector_store %arg7[%c0_6, %c0_7], %7 {strides = array<i32>} : memref<8x128xf32, #tpu.memory_space<vmem>>, vector<8x128xf32>,
    %c0_i32_8 = arith.constant 0 : i32
    %9 = arith.cmpi eq, %arg1, %c0_i32_8 : i32
    %10 = arith.extui %9 : i1 to i32
    %c0_i32_9 = arith.constant 0 : i32
    %11 = arith.cmpi ne, %10, %c0_i32_9 : i32
    scf.if %11 {
      %c0_10 = arith.constant 0 : index
      %c0_11 = arith.constant 0 : index
      %12 = vector.load %arg7[%c0_10, %c0_11] : memref<8x128xf32, #tpu.memory_space<vmem>>, vector<8x128xf32>
      %c0_12 = arith.constant 0 : index
      %c0_13 = arith.constant 0 : index
      %13 = vector.load %arg4[%c0_12, %c0_13] : memref<1x128xbf16, #tpu.memory_space<vmem>>, vector<1x128xbf16>
      %14 = arith.extf %13 : vector<1x128xbf16> to vector<1x128xf32>
      %15 = vector.broadcast %14 : vector<1x128xf32> to vector<8x128xf32>
      %16 = arith.addf %12, %15 : vector<8x128xf32>
      %17 = tpu.iota {dimensions = array<i32: 1>} : vector<8x128xi32>
      %18 = tpu.iota {dimensions = array<i32: 0>} : vector<8x1xi32>
      %c8_i32 = arith.constant 8 : i32
      %19 = arith.muli %arg0, %c8_i32 : i32
      %20 = vector.broadcast %19 : i32 to vector<8x1xi32>
      %21 = arith.addi %20, %18 : vector<8x1xi32>
      %c2_i32 = arith.constant 2 : i32
      %22 = vector.broadcast %c2_i32 : i32 to vector<8x1xi32>
      %23 = arith.cmpi slt, %21, %22 : vector<8x1xi32>
      %cst_14 = arith.constant 0.000000e+00 : f32
      %24 = vector.broadcast %cst_14 : f32 to vector<8x128xf32>
      %c0_i32_15 = arith.constant 0 : i32
      %25 = vector.broadcast %c0_i32_15 : i32 to vector<8x128xi32>
      %26 = arith.cmpi sge, %17, %25 : vector<8x128xi32>
      %c4_i32 = arith.constant 4 : i32
      %27 = vector.broadcast %c4_i32 : i32 to vector<8x128xi32>
      %28 = arith.cmpi slt, %17, %27 : vector<8x128xi32>
      %29 = arith.andi %26, %28 : vector<8x128xi1>
      %cst_16 = arith.constant -1.000000e+30 : f32
      %30 = vector.broadcast %cst_16 : f32 to vector<8x128xf32>
      %31 = arith.select %29, %16, %30 : vector<8x128xi1>, vector<8x128xf32>
      %cst_17 = arith.constant dense<0xFF800000> : vector<8xf32>
      %32 = vector.multi_reduction <maximumf>, %31, %cst_17 [1] : vector<8x128xf32> to vector<8xf32>
      %33 = vector.shape_cast %32 : vector<8xf32> to vector<8x1xf32>
      %34 = vector.shape_cast %33 : vector<8x1xf32> to vector<8x1xf32>
      %35 = vector.broadcast %34 : vector<8x1xf32> to vector<8x128xf32>
      %36 = arith.select %29, %35, %24 : vector<8x128xi1>, vector<8x128xf32>
      %c4_i32_18 = arith.constant 4 : i32
      %37 = vector.broadcast %c4_i32_18 : i32 to vector<8x128xi32>
      %38 = arith.cmpi sge, %17, %37 : vector<8x128xi32>
      %c12_i32 = arith.constant 12 : i32
      %39 = vector.broadcast %c12_i32 : i32 to vector<8x128xi32>
      %40 = arith.cmpi slt, %17, %39 : vector<8x128xi32>
      %41 = arith.andi %38, %40 : vector<8x128xi1>
      %cst_19 = arith.constant -1.000000e+30 : f32
      %42 = vector.broadcast %cst_19 : f32 to vector<8x128xf32>
      %43 = arith.select %41, %16, %42 : vector<8x128xi1>, vector<8x128xf32>
      %cst_20 = arith.constant dense<0xFF800000> : vector<8xf32>
      %44 = vector.multi_reduction <maximumf>, %43, %cst_20 [1] : vector<8x128xf32> to vector<8xf32>
      %45 = vector.shape_cast %44 : vector<8xf32> to vector<8x1xf32>
      %46 = vector.shape_cast %45 : vector<8x1xf32> to vector<8x1xf32>
      %47 = vector.broadcast %46 : vector<8x1xf32> to vector<8x128xf32>
      %48 = arith.select %41, %47, %36 : vector<8x128xi1>, vector<8x128xf32>
      %c12_i32_21 = arith.constant 12 : i32
      %49 = vector.broadcast %c12_i32_21 : i32 to vector<8x128xi32>
      %50 = arith.cmpi sge, %17, %49 : vector<8x128xi32>
      %c28_i32 = arith.constant 28 : i32
      %51 = vector.broadcast %c28_i32 : i32 to vector<8x128xi32>
      %52 = arith.cmpi slt, %17, %51 : vector<8x128xi32>
      %53 = arith.andi %50, %52 : vector<8x128xi1>
      %cst_22 = arith.constant -1.000000e+30 : f32
      %54 = vector.broadcast %cst_22 : f32 to vector<8x128xf32>
      %55 = arith.select %53, %16, %54 : vector<8x128xi1>, vector<8x128xf32>
      %cst_23 = arith.constant dense<0xFF800000> : vector<8xf32>
      %56 = vector.multi_reduction <maximumf>, %55, %cst_23 [1] : vector<8x128xf32> to vector<8xf32>
      %57 = vector.shape_cast %56 : vector<8xf32> to vector<8x1xf32>
      %58 = vector.shape_cast %57 : vector<8x1xf32> to vector<8x1xf32>
      %59 = vector.broadcast %58 : vector<8x1xf32> to vector<8x128xf32>
      %60 = arith.select %53, %59, %48 : vector<8x128xi1>, vector<8x128xf32>
      %61 = arith.subf %16, %60 : vector<8x128xf32>
      %c0_24 = arith.constant 0 : index
      %c0_25 = arith.constant 0 : index
      %62 = vector.load %arg5[%c0_24, %c0_25] : memref<8x3xi32, #tpu.memory_space<vmem>>, vector<8x3xi32>
      %63 = vector.extract_strided_slice %62 {offsets = [0, 0], sizes = [8, 1], strides = [1, 1]} : vector<8x3xi32> to vector<8x1xi32>
      %64 = vector.broadcast %63 : vector<8x1xi32> to vector<8x128xi32>
      %65 = arith.cmpi eq, %17, %64 : vector<8x128xi32>
      %66 = vector.extract_strided_slice %62 {offsets = [0, 1], sizes = [8, 1], strides = [1, 1]} : vector<8x3xi32> to vector<8x1xi32>
      %67 = vector.broadcast %66 : vector<8x1xi32> to vector<8x128xi32>
      %68 = arith.cmpi eq, %17, %67 : vector<8x128xi32>
      %69 = arith.ori %65, %68 : vector<8x128xi1>
      %70 = vector.extract_strided_slice %62 {offsets = [0, 2], sizes = [8, 1], strides = [1, 1]} : vector<8x3xi32> to vector<8x1xi32>
      %71 = vector.broadcast %70 : vector<8x1xi32> to vector<8x128xi32>
      %72 = arith.cmpi eq, %17, %71 : vector<8x128xi32>
      %73 = arith.ori %69, %72 : vector<8x128xi1>
      %cst_26 = arith.constant 0.000000e+00 : f32
      %74 = vector.broadcast %cst_26 : f32 to vector<8x128xf32>
      %75 = arith.select %73, %61, %74 : vector<8x128xi1>, vector<8x128xf32>
      %cst_27 = arith.constant dense<0.000000e+00> : vector<8xf32>
      %76 = vector.multi_reduction <add>, %75, %cst_27 [1] : vector<8x128xf32> to vector<8xf32>
      %77 = vector.shape_cast %76 : vector<8xf32> to vector<8x1xf32>
      %78 = math.exp %61 : vector<8x128xf32>
      %cst_28 = arith.constant 0.000000e+00 : f32
      %79 = vector.broadcast %cst_28 : f32 to vector<8x1xf32>
      %c0_i32_29 = arith.constant 0 : i32
      %80 = vector.broadcast %c0_i32_29 : i32 to vector<8x128xi32>
      %81 = arith.cmpi sge, %17, %80 : vector<8x128xi32>
      %c4_i32_30 = arith.constant 4 : i32
      %82 = vector.broadcast %c4_i32_30 : i32 to vector<8x128xi32>
      %83 = arith.cmpi slt, %17, %82 : vector<8x128xi32>
      %84 = arith.andi %81, %83 : vector<8x128xi1>
      %cst_31 = arith.constant 0.000000e+00 : f32
      %85 = vector.broadcast %cst_31 : f32 to vector<8x128xf32>
      %86 = arith.select %84, %78, %85 : vector<8x128xi1>, vector<8x128xf32>
      %cst_32 = arith.constant dense<0.000000e+00> : vector<8xf32>
      %87 = vector.multi_reduction <add>, %86, %cst_32 [1] : vector<8x128xf32> to vector<8xf32>
      %88 = vector.shape_cast %87 : vector<8xf32> to vector<8x1xf32>
      %89 = math.log %88 : vector<8x1xf32>
      %90 = arith.addf %79, %89 : vector<8x1xf32>
      %c4_i32_33 = arith.constant 4 : i32
      %91 = vector.broadcast %c4_i32_33 : i32 to vector<8x128xi32>
      %92 = arith.cmpi sge, %17, %91 : vector<8x128xi32>
      %c12_i32_34 = arith.constant 12 : i32
      %93 = vector.broadcast %c12_i32_34 : i32 to vector<8x128xi32>
      %94 = arith.cmpi slt, %17, %93 : vector<8x128xi32>
      %95 = arith.andi %92, %94 : vector<8x128xi1>
      %cst_35 = arith.constant 0.000000e+00 : f32
      %96 = vector.broadcast %cst_35 : f32 to vector<8x128xf32>
      %97 = arith.select %95, %78, %96 : vector<8x128xi1>, vector<8x128xf32>
      %cst_36 = arith.constant dense<0.000000e+00> : vector<8xf32>
      %98 = vector.multi_reduction <add>, %97, %cst_36 [1] : vector<8x128xf32> to vector<8xf32>
      %99 = vector.shape_cast %98 : vector<8xf32> to vector<8x1xf32>
      %100 = math.log %99 : vector<8x1xf32>
      %101 = arith.addf %90, %100 : vector<8x1xf32>
      %c12_i32_37 = arith.constant 12 : i32
      %102 = vector.broadcast %c12_i32_37 : i32 to vector<8x128xi32>
      %103 = arith.cmpi sge, %17, %102 : vector<8x128xi32>
      %c28_i32_38 = arith.constant 28 : i32
      %104 = vector.broadcast %c28_i32_38 : i32 to vector<8x128xi32>
      %105 = arith.cmpi slt, %17, %104 : vector<8x128xi32>
      %106 = arith.andi %103, %105 : vector<8x128xi1>
      %cst_39 = arith.constant 0.000000e+00 : f32
      %107 = vector.broadcast %cst_39 : f32 to vector<8x128xf32>
      %108 = arith.select %106, %78, %107 : vector<8x128xi1>, vector<8x128xf32>
      %cst_40 = arith.constant dense<0.000000e+00> : vector<8xf32>
      %109 = vector.multi_reduction <add>, %108, %cst_40 [1] : vector<8x128xf32> to vector<8xf32>
      %110 = vector.shape_cast %109 : vector<8xf32> to vector<8x1xf32>
      %111 = math.log %110 : vector<8x1xf32>
      %112 = arith.addf %101, %111 : vector<8x1xf32>
      %113 = arith.subf %112, %77 : vector<8x1xf32>
      %cst_41 = arith.constant 0.000000e+00 : f32
      %114 = vector.broadcast %cst_41 : f32 to vector<8x1xf32>
      %115 = arith.select %23, %113, %114 : vector<8x1xi1>, vector<8x1xf32>
      %116 = vector.shape_cast %115 : vector<8x1xf32> to vector<1x8x1xf32>
      %cst_42 = arith.constant dense<0.000000e+00> : vector<1xf32>
      %117 = vector.multi_reduction <add>, %116, %cst_42 [1, 2] : vector<1x8x1xf32> to vector<1xf32>
      %118 = vector.shape_cast %117 : vector<1xf32> to vector<1x1x1xf32>
      %119 = vector.extract %118[0, 0, 0] : f32 from vector<1x1x1xf32>
      %120 = vector.broadcast %119 : f32 to vector<1x8x128xf32>
      %c0_43 = arith.constant 0 : index
      %c0_44 = arith.constant 0 : index
      %c0_45 = arith.constant 0 : index
      %121 = vector.load %arg6[%c0_43, %c0_44, %c0_45] : memref<1x8x128xf32, #tpu.memory_space<vmem>>, vector<1x8x128xf32>
      tpu.vector_store %arg6[%c0_43, %c0_44, %c0_45], %120 {strides = array<i32>} : memref<1x8x128xf32, #tpu.memory_space<vmem>>, vector<1x8x128xf32>,
    } else {
    }
    return
  }
  func.func @transform_0(%arg0: i32, %arg1: i32) -> (i32, i32) {
    %c0_i32 = arith.constant 0 : i32
    return %arg0, %arg1 : i32, i32
  }
  func.func @transform_1(%arg0: i32, %arg1: i32) -> (i32, i32) {
    %c0_i32 = arith.constant 0 : i32
    %c0_i32_0 = arith.constant 0 : i32
    return %arg1, %c0_i32 : i32, i32
  }
  func.func @transform_2(%arg0: i32, %arg1: i32) -> (i32, i32) {
    %c0_i32 = arith.constant 0 : i32
    %c0_i32_0 = arith.constant 0 : i32
    %c0_i32_1 = arith.constant 0 : i32
    return %c0_i32, %c0_i32_0 : i32, i32
  }
  func.func @transform_3(%arg0: i32, %arg1: i32) -> (i32, i32) {
    %c0_i32 = arith.constant 0 : i32
    %c0_i32_0 = arith.constant 0 : i32
    return %arg0, %c0_i32 : i32, i32
  }
  func.func @transform_4(%arg0: i32, %arg1: i32) -> (i32, i32, i32) {
    %c0_i32 = arith.constant 0 : i32
    %c0_i32_0 = arith.constant 0 : i32
    %c0_i32_1 = arith.constant 0 : i32
    return %arg0, %c0_i32, %c0_i32_0 : i32, i32, i32
  }
}

</mosaic_0001>

<llo_original>
// kernel: tpu_custom_call.1
$region0: #{tpu_custom_call.1}
  #allocation0 [shape = 'u32[]', space=smem, size = 0x4, offset = 0x4, fixed_abs, tag = 'smem constant byte address 0x4 - core index']
  #allocation1 [shape = 'u32[144,128]{1,0:T(1,128)}', space=vmem, size = 0x12000, scoped, tag = 'internal scratch']
  #allocation2 [shape = 'f32[8,128]{1,0:T(8,128)}', space=vmem, size = 0x1000, scoped, tag = 'scratch operand']
  %s0 = inlined_call_operand.vmem [shape: bf16[8,256], index: 0, kind: input, shape index: {}]
  %s1 = inlined_call_operand.hbm [shape: bf16[256,128], index: 1, kind: input, shape index: {}]
  %s2 = inlined_call_operand.vmem [shape: bf16[1,128], index: 2, kind: input, shape index: {}]
  %s3 = inlined_call_operand.vmem [shape: s32[8,3], index: 3, kind: input, shape index: {}]
  %s4 = inlined_call_operand.hbm [shape: f32[1,8,128], index: 4, kind: output, shape index: {}]
  %s5 = sld [smem:[#allocation0]]
  $region38: #{tpu_custom_call.1} parent=0
    _
  %s7 = ssub.s32 1, %s5
  %s8 = scalar_select 0, %s7, %s5
  $region1: #{tpu_custom_call.1} parent=0
    #allocation3 [shape = 'u8[65536]{0}', space=vmem, size = 0x10000, scoped, tag = 'input window, operand 1, single buffered']
    #allocation4 [shape = 's32[1]{0}', space=sflag, size = 0x4, scoped, tag = 'scoped memory for tpu_custom_call.1']
    #allocation5 [shape = 's32[1]{0}', space=sflag, size = 0x4, scoped, tag = 'scoped memory for tpu_custom_call.1']
    #allocation6 [shape = 'u8[4096]{0}', space=vmem, size = 0x1000, scoped, tag = 'output window, operand 0, single buffered']
    %9 = vsyncpa [#allocation4], 0
    %10 = vsyncpa [#allocation5], 0
    // Predicated region
    $region2: #{tpu_custom_call.1} parent=1 // pred_check
      _
    $region3: #{tpu_custom_call.1} parent=1 // pred_check_branch
      %12 = sbr.rel (0) target = $region5
    $region4: #{tpu_custom_call.1} parent=1 // pred_region
      _
    $region5: #{tpu_custom_call.1} parent=1 // pred_fallthru
      _
    // Predicated region
    $region6: #{tpu_custom_call.1} parent=1 // pred_check
      _
    $region7: #{tpu_custom_call.1} parent=1 // pred_check_branch
      %14 = sbr.rel (0) target = $region9
    $region8: #{tpu_custom_call.1} parent=1 // pred_region
      %s16 = ssub.s32 2048, 2048
      %17 = vsyncadd [#allocation4], %s16
      %s18 = sshll.u32 [#allocation3], 4
      %s19 = int_to_ptr.vmem [resolvable:$true] %s18
      %24 = dma.hbm_to_vmem [thread:$0]  %s1, 2048, %s19, [#allocation4], 64, 64, 4
    $region9: #{tpu_custom_call.1} parent=1 // pred_fallthru
      _
    // Predicated region
    $region10: #{tpu_custom_call.1} parent=1 // pred_check
      _
    $region11: #{tpu_custom_call.1} parent=1 // pred_check_branch
      %26 = sbr.rel (0) target = $region13
    $region12: #{tpu_custom_call.1} parent=1 // pred_region
      _
    $region13: #{tpu_custom_call.1} parent=1 // pred_fallthru
      _
    // Predicated region
    $region14: #{tpu_custom_call.1} parent=1 // pred_check
      _
    $region15: #{tpu_custom_call.1} parent=1 // pred_check_branch
      %28 = sbr.rel (0) target = $region17
    $region16: #{tpu_custom_call.1} parent=1 // pred_region
      _
    $region17: #{tpu_custom_call.1} parent=1 // pred_fallthru
      _
    // Predicated region
    $region18: #{tpu_custom_call.1} parent=1 // pred_check
      _
    $region19: #{tpu_custom_call.1} parent=1 // pred_check_branch
      %30 = sbr.rel (0) target = $region21
    $region20: #{tpu_custom_call.1} parent=1 // pred_region
      %31 = dma.done [#allocation4], 2048
    $region21: #{tpu_custom_call.1} parent=1 // pred_fallthru
      _
    %p33 = scmp.eq.s32.totalorder 0, 0
    // Predicated region
    $region22: #{tpu_custom_call.1} parent=1 // pred_check
      %p34 = pneg %p33
    $region23: #{tpu_custom_call.1} parent=1 // pred_check_branch
      %36 = sbr.rel (%p34) target = $region25
    $region24: #{tpu_custom_call.1} parent=1 // pred_region
      %37 = vst [vmem:[#allocation2] sm:$0xff] 0.0
    $region25: #{tpu_custom_call.1} parent=1 // pred_fallthru
      _
    %v38 = vld [vmem:[#allocation2] sm:$0xff]
    %v39 = vld [vmem:[%s0] sm:$0xff]
    %v40 = vld [vmem:[#allocation3] sm:$0xf]
    %v41 = vld [vmem:[#allocation3 + $0x4] sm:$0xf]
    %v42 = vld [vmem:[#allocation3 + $0x8] sm:$0xf]
    %v43 = vld [vmem:[#allocation3 + $0xc] sm:$0xf]
    %v44 = vld [vmem:[#allocation3 + $0x10] sm:$0xf]
    %v45 = vld [vmem:[#allocation3 + $0x14] sm:$0xf]
    %v46 = vld [vmem:[#allocation3 + $0x18] sm:$0xf]
    %v47 = vld [vmem:[#allocation3 + $0x1c] sm:$0xf]
    %v48 = vld [vmem:[#allocation3 + $0x20] sm:$0xf]
    %v49 = vld [vmem:[#allocation3 + $0x24] sm:$0xf]
    %v50 = vld [vmem:[#allocation3 + $0x28] sm:$0xf]
    %v51 = vld [vmem:[#allocation3 + $0x2c] sm:$0xf]
    %v52 = vld [vmem:[#allocation3 + $0x30] sm:$0xf]
    %v53 = vld [vmem:[#allocation3 + $0x34] sm:$0xf]
    %v54 = vld [vmem:[#allocation3 + $0x38] sm:$0xf]
    %v55 = vld [vmem:[#allocation3 + $0x3c] sm:$0xf]
    %v56 = vld [vmem:[#allocation3 + $0x40] sm:$0xf]
    %v57 = vld [vmem:[#allocation3 + $0x44] sm:$0xf]
    %v58 = vld [vmem:[#allocation3 + $0x48] sm:$0xf]
    %v59 = vld [vmem:[#allocation3 + $0x4c] sm:$0xf]
    %v60 = vld [vmem:[#allocation3 + $0x50] sm:$0xf]
    %v61 = vld [vmem:[#allocation3 + $0x54] sm:$0xf]
    %v62 = vld [vmem:[#allocation3 + $0x58] sm:$0xf]
    %v63 = vld [vmem:[#allocation3 + $0x5c] sm:$0xf]
    %v64 = vld [vmem:[#allocation3 + $0x60] sm:$0xf]
    %v65 = vld [vmem:[#allocation3 + $0x64] sm:$0xf]
    %v66 = vld [vmem:[#allocation3 + $0x68] sm:$0xf]
    %v67 = vld [vmem:[#allocation3 + $0x6c] sm:$0xf]
    %v68 = vld [vmem:[#allocation3 + $0x70] sm:$0xf]
    %v69 = vld [vmem:[#allocation3 + $0x74] sm:$0xf]
    %v70 = vld [vmem:[#allocation3 + $0x78] sm:$0xf]
    %v71 = vld [vmem:[#allocation3 + $0x7c] sm:$0xf]
    %v73 = vunpack.c.l.b16 %v39
    %v74 = vunpack.c.h.b16 %v39
    %v75 = vpack.c.b16 %v73, %v73
    %v76 = vpack.c.b16 %v74, %v74
    %v111 = vunpack.c.l.b16 %v40
    %v112 = vunpack.c.l.b16 %v41
    %v113 = vunpack.c.l.b16 %v42
    %v114 = vunpack.c.l.b16 %v43
    %v115 = vunpack.c.l.b16 %v44
    %v116 = vunpack.c.l.b16 %v45
    %v117 = vunpack.c.l.b16 %v46
    %v118 = vunpack.c.l.b16 %v47
    %v119 = vunpack.c.l.b16 %v48
    %v120 = vunpack.c.l.b16 %v49
    %v121 = vunpack.c.l.b16 %v50
    %v122 = vunpack.c.l.b16 %v51
    %v123 = vunpack.c.l.b16 %v52
    %v124 = vunpack.c.l.b16 %v53
    %v125 = vunpack.c.l.b16 %v54
    %v126 = vunpack.c.l.b16 %v55
    %v127 = vunpack.c.l.b16 %v56
    %v128 = vunpack.c.l.b16 %v57
    %v129 = vunpack.c.l.b16 %v58
    %v130 = vunpack.c.l.b16 %v59
    %v131 = vunpack.c.l.b16 %v60
    %v132 = vunpack.c.l.b16 %v61
    %v133 = vunpack.c.l.b16 %v62
    %v134 = vunpack.c.l.b16 %v63
    %v135 = vunpack.c.l.b16 %v64
    %v136 = vunpack.c.l.b16 %v65
    %v137 = vunpack.c.l.b16 %v66
    %v138 = vunpack.c.l.b16 %v67
    %v139 = vunpack.c.l.b16 %v68
    %v140 = vunpack.c.l.b16 %v69
    %v141 = vunpack.c.l.b16 %v70
    %v142 = vunpack.c.l.b16 %v71
    %v143 = vpack.c.b16 %v112, %v111
    %v144 = vpack.c.b16 %v114, %v113
    %v145 = vpack.c.b16 %v116, %v115
    %v146 = vpack.c.b16 %v118, %v117
    %v147 = vpack.c.b16 %v120, %v119
    %v148 = vpack.c.b16 %v122, %v121
    %v149 = vpack.c.b16 %v124, %v123
    %v150 = vpack.c.b16 %v126, %v125
    %v151 = vpack.c.b16 %v128, %v127
    %v152 = vpack.c.b16 %v130, %v129
    %v153 = vpack.c.b16 %v132, %v131
    %v154 = vpack.c.b16 %v134, %v133
    %v155 = vpack.c.b16 %v136, %v135
    %v156 = vpack.c.b16 %v138, %v137
    %v157 = vpack.c.b16 %v140, %v139
    %v158 = vpack.c.b16 %v142, %v141
    %175 = vmatprep.subr.bf16.mxu0 0
    %176 = vmatpush1.bf16.msra.mxu0 %v150
    %177 = vmatprep.subr.bf16.mxu0 0
    %178 = vmatpush1.bf16.msra.mxu0 %v149
    %179 = vmatprep.subr.bf16.mxu0 0
    %180 = vmatpush1.bf16.msra.mxu0 %v148
    %181 = vmatprep.subr.bf16.mxu0 0
    %182 = vmatpush1.bf16.msra.mxu0 %v147
    %183 = vmatprep.subr.bf16.mxu0 0
    %184 = vmatpush1.bf16.msra.mxu0 %v146
    %185 = vmatprep.subr.bf16.mxu0 0
    %186 = vmatpush1.bf16.msra.mxu0 %v145
    %187 = vmatprep.subr.bf16.mxu0 0
    %188 = vmatpush1.bf16.msra.mxu0 %v144
    %189 = vmatprep.subr.bf16.mxu0 0
    %190 = vmatpush1.bf16.msra.mxu0 %v143
    %191 = vmatprep.subr.bf16.mxu0 0
    %192 = vmatpush2.bf16.msra.mxu0 %v158
    %193 = vmatprep.subr.bf16.mxu0 0
    %194 = vmatpush2.bf16.msra.mxu0 %v157
    %195 = vmatprep.subr.bf16.mxu0 0
    %196 = vmatpush2.bf16.msra.mxu0 %v156
    %197 = vmatprep.subr.bf16.mxu0 0
    %198 = vmatpush2.bf16.msra.mxu0 %v155
    %199 = vmatprep.subr.bf16.mxu0 0
    %200 = vmatpush2.bf16.msra.mxu0 %v154
    %201 = vmatprep.subr.bf16.mxu0 0
    %202 = vmatpush2.bf16.msra.mxu0 %v153
    %203 = vmatprep.subr.bf16.mxu0 0
    %204 = vmatpush2.bf16.msra.mxu0 %v152
    %205 = vmatprep.subr.bf16.mxu0 0
    %206 = vmatpush2.bf16.msra.mxu0 %v151
    %207 = vmatprep.mubr.bf16.mxu0 %v76
    %208 = vmatmul.mubr.bf16.gmra.mxu0 %v75
    %v209 = vpop.f32.mrf.mxu0
    %v210 = vadd.f32 0.0, %v209
    %v211 = vpop.f32.mrf.mxu0
    %v212 = vpop.f32.mrf.mxu0
    %v213 = vpop.f32.mrf.mxu0
    %214 = vdwg.mxu0
    %v215 = vadd.f32 %v38, %v210
    %216 = vst [vmem:[#allocation2] sm:$0xff] %v215
    // Predicated region
    $region26: #{tpu_custom_call.1} parent=1 // pred_check
      %p217 = pneg %p33
    $region27: #{tpu_custom_call.1} parent=1 // pred_check_branch
      %219 = sbr.rel (%p217) target = $region29
    $region28: #{tpu_custom_call.1} parent=1 // pred_region
      %v220 = vld [vmem:[#allocation2] sm:$0xff]
      %v221 = vld [vmem:[%s2] sm:$0x1]
      %v222 = vunpack.c.l.bf16 %v221
      %v223 = vlaneseq
      %v224 = vshrl.u32 %v223, 7
      %v225 = vsub.s32 0, %v224
      %v226 = vrot.slane %v222, %v225
      %v227 = vadd.f32 %v220, %v226
      %v228 = vlaneseq
      %v229 = vand.u32 %v228, 127
      %v230 = vlaneseq
      %v231 = vshrl.u32 %v230, 7
      %s232 = smul.u32 0, 8
      %v233 = vstv %s232
      %v234 = vadd.s32 %v233, %v231
      %vm235 = vcmp.lt.s32.totalorder %v234, 2
      %vm236 = vcmp.ge.s32.totalorder %v229, 0
      %vm237 = vcmp.lt.s32.totalorder %v229, 4
      %vm238 = vmand %vm236, %vm237
      %v239 = vsel %vm238, %v227, -1e+30
      %240 = vmax.xlane.f32.xlu0 %v239
      %v241 = vpop.xlane.xlu0 %240
      %v242 = vsel %vm238, %v241, 0.0
      %vm243 = vcmp.ge.s32.totalorder %v229, 4
      %vm244 = vcmp.lt.s32.totalorder %v229, 12
      %vm245 = vmand %vm243, %vm244
      %v246 = vsel %vm245, %v227, -1e+30
      %247 = vmax.xlane.f32.xlu0 %v246
      %v248 = vpop.xlane.xlu0 %247
      %v249 = vsel %vm245, %v248, %v242
      %vm250 = vcmp.ge.s32.totalorder %v229, 12
      %vm251 = vcmp.lt.s32.totalorder %v229, 28
      %vm252 = vmand %vm250, %vm251
      %v253 = vsel %vm252, %v227, -1e+30
      %254 = vmax.xlane.f32.xlu0 %v253
      %v255 = vpop.xlane.xlu0 %254
      %v256 = vsel %vm252, %v255, %v249
      %v257 = vsub.f32 %v227, %v256
      %v258 = vld [vmem:[%s3] sm:$0xff]
      %259 = vset.pattern.permute.xlu0 0
      %260 = vperm.xlu0 %259, %v258
      %v261 = vpop.permute.xlu0 %260
      %vm262 = vcmp.eq.s32.totalorder %v229, %v261
      %263 = vset.pattern.permute.xlu0 1
      %264 = vperm.xlu0 %263, %v258
      %v265 = vpop.permute.xlu0 %264
      %vm266 = vcmp.eq.s32.totalorder %v229, %v265
      %vm267 = vmor %vm262, %vm266
      %268 = vset.pattern.permute.xlu0 2
      %269 = vperm.xlu0 %268, %v258
      %v270 = vpop.permute.xlu0 %269
      %vm271 = vcmp.eq.s32.totalorder %v229, %v270
      %vm272 = vmor %vm267, %vm271
      %v273 = vsel %vm272, %v257, 0.0
      %274 = vadd.xlane.f32.xlu0 %v273
      %v275 = vpop.xlane.xlu0 %274
      %v276 = vmul.f32 %v257, 1.442695
      %v277 = vpow.pop %v276
      %v278 = vsel %vm238, %v277, 0.0
      %279 = vadd.xlane.f32.xlu0 %v278
      %v280 = vpop.xlane.xlu0 %279
      %v281 = vlog2.pop %v280
      %v282 = vmul.f32 %v281, 0.6931472
      %v283 = vadd.f32 %v282, 0.0
      %v284 = vsel %vm245, %v277, 0.0
      %285 = vadd.xlane.f32.xlu0 %v284
      %v286 = vpop.xlane.xlu0 %285
      %v287 = vlog2.pop %v286
      %v288 = vmul.f32 %v287, 0.6931472
      %v289 = vadd.f32 %v283, %v288
      %v290 = vsel %vm252, %v277, 0.0
      %291 = vadd.xlane.f32.xlu0 %v290
      %v292 = vpop.xlane.xlu0 %291
      %v293 = vlog2.pop %v292
      %v294 = vmul.f32 %v293, 0.6931472
      %v295 = vadd.f32 %v289, %v294
      %v296 = vsub.f32 %v295, %v275
      %v297 = vsel %vm235, %v296, 0.0
      %vm298 = vcmask 7168
      %v299 = vsel %vm298, %v297, 0.0
      %300 = vadd.xlane.f32.xlu0 %v299
      %v301 = vpop.xlane.xlu0 %300
      %v302 = vrot.slane %v301, 4
      %v303 = vadd.f32 %v301, %v302
      %v304 = vrot.slane %v303, 2
      %v305 = vadd.f32 %v303, %v304
      %v306 = vrot.slane %v305, 1
      %v307 = vadd.f32 %v305, %v306
      %s308 = vtos %v307
      %v309 = vstv %s308
      %310 = vst [vmem:[#allocation6] sm:$0xff] %v309
    $region29: #{tpu_custom_call.1} parent=1 // pred_fallthru
      _
    // Predicated region
    $region30: #{tpu_custom_call.1} parent=1 // pred_check
      _
    $region31: #{tpu_custom_call.1} parent=1 // pred_check_branch
      %312 = sbr.rel (0) target = $region33
    $region32: #{tpu_custom_call.1} parent=1 // pred_region
      %s314 = ssub.s32 128, 128
      %315 = vsyncadd [#allocation5], %s314
      %s317 = sshll.u32 [#allocation6], 4
      %s318 = int_to_ptr.vmem [resolvable:$true] %s317
      %320 = dma.vmem_to_hbm [thread:$0]  %s318, 128, %s4, [#allocation5]
    $region33: #{tpu_custom_call.1} parent=1 // pred_fallthru
      _
    // Predicated region
    $region34: #{tpu_custom_call.1} parent=1 // pred_check
      _
    $region35: #{tpu_custom_call.1} parent=1 // pred_check_branch
      %322 = sbr.rel (0) target = $region37
    $region36: #{tpu_custom_call.1} parent=1 // pred_region
      %323 = dma.done [#allocation5], 128
    $region37: #{tpu_custom_call.1} parent=1 // pred_fallthru
      _
    %324 = vsyncpa [#allocation4], 1
    %325 = vsyncpa [#allocation5], 1

</llo_original>
